<compile_context>
chip_gen: v5e
topology: v5e:2x2
jax: 0.10.0
libtpu: 0.0.40
codegen_flags: <defaults>
</compile_context>

<pallas_src>
import functools

import jax
import jax.numpy as jnp
from jax.experimental import pallas as pl
from jax.experimental.pallas import tpu as pltpu

NEGATIVE_SLOPE = 0.2      # GATConv leaky_relu slope (kernel + alpha wrapper must agree)
LN_EPS = 1e-5             # LayerNorm epsilon


def _round_up(x, m):
    return (x + m - 1) // m * m


def _vmem_cost_bytes(tm, n_pad, hc, h):
    """Rough per-step VMEM footprint of the attention kernel: double-buffered
    streams + resident blocks + f32 temporaries, with (sublane, lane) padding."""
    lane = lambda c: _round_up(c, 128)
    adj = 2 * _round_up(tm, 32) * lane(n_pad) * 1              # int8 stream
    x_l = 2 * _round_up(n_pad, 16) * lane(hc) * 2              # bf16 resident
    a_src_t = 2 * _round_up(h, 8) * lane(n_pad) * 4
    a_dst = 2 * _round_up(tm, 8) * lane(h) * 4
    outs = 2 * _round_up(tm, 8) * (lane(hc) + lane(2 * h)) * 4
    consts = 4 * 8 * lane(hc) * 4
    temps = 4 * _round_up(tm, 8) * lane(n_pad) * 4             # scores / e / masks
    return adj + x_l + a_src_t + a_dst + outs + consts + temps


def _choose_row_tile(n, hc, h, budget_bytes):
    """Largest multiple-of-32 destination-row tile (<=256) that fits the budget."""
    tm = min(256, _round_up(n, 32))
    while tm > 32 and _vmem_cost_bytes(tm, _round_up(n, tm), hc, h) > budget_bytes:
        tm -= 32
    # v7x has 2 TensorCores: keep >= ~4 grid steps when the graph is big enough,
    # but never shrink tiles below 128 rows for it.
    if n >= 4 * 128:
        tm = min(tm, max(128, _round_up(-(-n // 4), 32)))
    return tm


# ---------------------------------------------------------------------------
# Kernel 1: fused GATConv projections (row-tiled, single MXU matmul).
# ---------------------------------------------------------------------------
def proj_kernel(x_ref, w_all_ref, x_l_ref, a_ref, *, hc):
    # one matmul: [tm, D] @ [D, HC + 2H]  (att vectors folded into the weight)
    full = jnp.dot(x_ref[...], w_all_ref[...], preferred_element_type=jnp.float32)
    x_l_ref[...] = full[:, :hc].astype(x_l_ref.dtype)    # bf16 copy for kernel 2
    a_ref[...] = full[:, hc:]                            # [tm, 2H] f32 (a_src | a_dst)


# ---------------------------------------------------------------------------
# Kernel 2: masked softmax + aggregation + LayerNorm + PReLU per dst-row tile.
# ---------------------------------------------------------------------------
def gat_row_kernel(adj_ref, x_l_ref, a_src_t_ref, a_dst_ref,
                   bias_ref, gamma_ref, beta_ref, prelu_ref,
                   out_ref, stats_ref, *, heads, out_ch, negative_slope, ln_eps):
    H, C = heads, out_ch
    adj_mask = adj_ref[...] != 0                        # int8 -> bool, hoisted once
    a_dst = a_dst_ref[...]                              # [tm, H]  f32
    a_src_t = a_src_t_ref[...]                          # [H, N]   f32
    neg_big = jnp.float32(-1e9)  # finite mask keeps zero-in-degree / padded rows NaN-free

    head_out, row_max, row_den = [], [], []
    # TODO(synk): if H grows beyond ~8, chunk this loop (lax.fori_loop(unroll=True))
    #             so each head's [tm, N] temporaries die before the next head.
    for h in range(H):
        # scores[i, j] = leaky_relu(a_dst[i, h] + a_src[j, h]), masked by adjacency
        scores = a_dst[:, h:h + 1] + a_src_t[h:h + 1, :]                  # [tm, N]
        scores = jnp.where(scores > 0, scores, negative_slope * scores)
        scores = jnp.where(adj_mask, scores, neg_big)
        m = jnp.max(scores, axis=-1, keepdims=True)                       # [tm, 1]
        e = jnp.where(adj_mask, jnp.exp(scores - m), 0.0)                 # [tm, N]
        s = jnp.maximum(jnp.sum(e, axis=-1, keepdims=True), jnp.float32(1e-16))
        inv = pl.reciprocal(s, approx=True)             # EUP slot (otherwise idle)
        inv = inv * (2.0 - s * inv)                     # one Newton step -> ~f32 exact
        # MXU aggregation (bf16 in, f32 acc); normalize AFTER the matmul so the
        # scaling is a [tm, C] multiply instead of a [tm, N] one.
        # TODO(synk): for large C*N restructure so each matmul emits >=128 output
        #             lanes (transposed product / head batching); with small C the
        #             MXU has slack and the VALU/EUP chain dominates anyway.
        agg = jnp.dot(e.astype(x_l_ref.dtype), x_l_ref[:, h * C:(h + 1) * C],
                      preferred_element_type=jnp.float32)                 # [tm, C]
        head_out.append(agg * inv)
        row_max.append(m)
        row_den.append(s)

    out = jnp.concatenate(head_out, axis=-1) + bias_ref[...]              # [tm, HC]

    # LayerNorm over features (row-wise == the reference's per-batch-group loop)
    mu = jnp.mean(out, axis=-1, keepdims=True)
    var = jnp.mean((out - mu) * (out - mu), axis=-1, keepdims=True)
    y = (out - mu) * jax.lax.rsqrt(var + ln_eps) * gamma_ref[...] + beta_ref[...]

    # PReLU + a single store per tile
    out_ref[...] = jnp.where(y > 0, y, prelu_ref[...] * y)
    # softmax stats written once, lane-merged (no per-head 1-lane column writes)
    stats_ref[...] = jnp.concatenate(row_max + row_den, axis=-1)          # [tm, 2H]


# ---------------------------------------------------------------------------
# Wrapper
# ---------------------------------------------------------------------------
def gat_module_forward(x, edge_index, params, *, heads, out_ch,
                       row_tile=None, vmem_budget_bytes=40 * 2**20):
    """Eval-mode GAT_module.forward. Returns (x_after, (edge_index, alpha))."""
    N, D = x.shape
    H, C = heads, out_ch
    HC = H * C
    src, dst = edge_index[0], edge_index[1]

    if row_tile is None:
        tm = _choose_row_tile(N, HC, H, vmem_budget_bytes)
    else:
        tm = max(32, _round_up(row_tile, 32))        # int8 adj needs 32-row tiles
    n_pad = _round_up(N, tm)
    grid = (n_pad // tm,)

    vmem_limit = int(min(max(2 * _vmem_cost_bytes(tm, n_pad, HC, H), 32 * 2**20),
                         48 * 2**20))
    par = pltpu.CompilerParams(dimension_semantics=("parallel",),
                               vmem_limit_bytes=vmem_limit)

    # zero-pad nodes to a tile multiple (padded rows/cols carry no edges -> inert)
    x_p = jnp.pad(x, ((0, n_pad - N), (0, 0)))

    # dense adjacency as int8: adj[i, j] = 1 iff edge j -> i   (i = dst, j = src)
    adj = jnp.zeros((n_pad, n_pad), jnp.int8).at[dst, src].set(1)

    # fold attention vectors into the projection weights and fuse all three
    # projections into one [D, HC + 2H] weight (single MXU matmul in kernel 1).
    w_att_src = (params["w_src"].reshape(D, H, C) * params["att_src"][None]).sum(-1)
    w_att_dst = (params["w_dst"].reshape(D, H, C) * params["att_dst"][None]).sum(-1)
    w_all = jnp.concatenate([params["w_src"], w_att_src, w_att_dst], axis=1)

    # ---- kernel 1: fused projections ----
    x_l, a_cat = pl.pallas_call(
        functools.partial(proj_kernel, hc=HC),
        out_shape=(jax.ShapeDtypeStruct((n_pad, HC), jnp.bfloat16),
                   jax.ShapeDtypeStruct((n_pad, 2 * H), jnp.float32)),
        grid_spec=pltpu.PrefetchScalarGridSpec(
            num_scalar_prefetch=0, grid=grid,
            in_specs=[pl.BlockSpec((tm, D), lambda i: (i, 0)),
                      pl.BlockSpec((D, HC + 2 * H), lambda i: (0, 0))],
            out_specs=(pl.BlockSpec((tm, HC), lambda i: (i, 0)),
                       pl.BlockSpec((tm, 2 * H), lambda i: (i, 0)))),
        compiler_params=par,
    )(x_p, w_all)

    a_src, a_dst = a_cat[:, :H], a_cat[:, H:]
    a_src_t = a_src.T                      # [H, n_pad] tiny one-off transpose (XLA)

    # ---- kernel 2: attention + aggregation + LayerNorm + PReLU ----
    kernel = functools.partial(gat_row_kernel, heads=H, out_ch=C,
                               negative_slope=NEGATIVE_SLOPE, ln_eps=LN_EPS)
    x_after_p, stats = pl.pallas_call(
        kernel,
        out_shape=(jax.ShapeDtypeStruct((n_pad, HC), jnp.float32),
                   jax.ShapeDtypeStruct((n_pad, 2 * H), jnp.float32)),
        grid_spec=pltpu.PrefetchScalarGridSpec(
            num_scalar_prefetch=0, grid=grid,
            in_specs=[pl.BlockSpec((tm, n_pad), lambda i: (i, 0)),    # adj (int8)
                      pl.BlockSpec((n_pad, HC), lambda i: (0, 0)),    # x_l (bf16, resident)
                      pl.BlockSpec((H, n_pad), lambda i: (0, 0)),     # a_src^T (resident)
                      pl.BlockSpec((tm, H), lambda i: (i, 0)),        # a_dst row tile
                      pl.BlockSpec((1, HC), lambda i: (0, 0)),        # bias
                      pl.BlockSpec((1, HC), lambda i: (0, 0)),        # LN gamma
                      pl.BlockSpec((1, HC), lambda i: (0, 0)),        # LN beta
                      pl.BlockSpec((1, HC), lambda i: (0, 0))],       # PReLU slope
            out_specs=(pl.BlockSpec((tm, HC), lambda i: (i, 0)),
                       pl.BlockSpec((tm, 2 * H), lambda i: (i, 0)))),
        compiler_params=par,
    )(adj, x_l, a_src_t, a_dst, params["bias"], params["gamma"],
      params["beta"], params["prelu"])

    x_after = x_after_p[:N]
    row_max, row_den = stats[:, :H], stats[:, H:]

    # per-edge attention (return_attention_weights=True): O(E*H) gather over the
    # tiny [N, H] softmax stats -- no dense [H, N, N] HBM materialization.
    s_e = a_dst[dst] + a_src[src]                        # [E, H] f32
    s_e = jnp.where(s_e > 0, s_e, NEGATIVE_SLOPE * s_e)
    alpha = jnp.exp(s_e - row_max[dst]) / row_den[dst]   # [E, H]
    return x_after, (edge_index, alpha)


# ---------------------------------------------------------------------------
# Pure-JAX (f32) reference of the same eval-mode forward pass.
# ---------------------------------------------------------------------------
def reference_forward(x, edge_index, params, *, heads, out_ch):
    N = x.shape[0]
    H, C = heads, out_ch
    src, dst = edge_index[0], edge_index[1]
    adj = jnp.zeros((N, N), jnp.float32).at[dst, src].set(1.0)
    x_l = (x @ params["w_src"]).reshape(N, H, C)
    x_r = (x @ params["w_dst"]).reshape(N, H, C)
    a_src = (x_l * params["att_src"][None]).sum(-1)            # [N, H]
    a_dst = (x_r * params["att_dst"][None]).sum(-1)            # [N, H]
    scores = a_dst[:, None, :] + a_src[None, :, :]             # [N_dst, N_src, H]
    scores = jnp.where(scores > 0, scores, NEGATIVE_SLOPE * scores)
    scores = jnp.where(adj[:, :, None] > 0, scores, -1e9)
    m = scores.max(axis=1, keepdims=True)
    e = jnp.exp(scores - m) * adj[:, :, None]
    s = jnp.maximum(e.sum(axis=1, keepdims=True), 1e-16)
    attn = e / s                                               # [N, N, H]
    out = jnp.einsum("ijh,jhc->ihc", attn, x_l).reshape(N, H * C) + params["bias"][0]
    mu = out.mean(-1, keepdims=True)
    var = ((out - mu) ** 2).mean(-1, keepdims=True)
    y = (out - mu) * jax.lax.rsqrt(var + LN_EPS) * params["gamma"][0] + params["beta"][0]
    y = jnp.where(y > 0, y, params["prelu"][0] * y)
    alpha = attn[dst, src, :]                                  # [E, H]
    return y, alpha


if __name__ == "__main__":
    # module hyperparameters (small, consistent with GAT_module.__init__)
    N = 16           # number of graph nodes
    D = 32           # input_dim
    C = 8            # output_dim (per head)
    H = 4            # head_num   -> output channels = H*C = 32
    E_DIM = 8        # edge_attr feature dim (unused: with_edge='N')

    key = jax.random.PRNGKey(0)
    k = jax.random.split(key, 8)

    # node features and graph connectivity (ring both directions + self loops)
    x = jax.random.normal(k[0], (N, D), jnp.float32)
    fwd = jnp.stack([jnp.arange(N), (jnp.arange(N) + 1) % N])
    bwd = jnp.stack([(jnp.arange(N) + 1) % N, jnp.arange(N)])
    loops = jnp.stack([jnp.arange(N), jnp.arange(N)])
    edge_index = jnp.concatenate([fwd, bwd, loops], axis=1).astype(jnp.int32)  # [2, E]
    edge_attr = jax.random.normal(k[1], (edge_index.shape[1], E_DIM), jnp.float32)
    batch = jnp.concatenate([jnp.zeros(N // 2, jnp.int32), jnp.ones(N - N // 2, jnp.int32)])
    del edge_attr, batch  # with_edge='N'; LayerNorm is row-wise -> batch loop is a no-op

    # deterministic parameter init (GATConv + LayerNorm + PReLU shapes)
    params = {
        "w_src":   jax.random.normal(k[2], (D, H * C), jnp.float32) * 0.1,
        "w_dst":   jax.random.normal(k[3], (D, H * C), jnp.float32) * 0.1,
        "att_src": jax.random.normal(k[4], (H, C), jnp.float32) * 0.1,
        "att_dst": jax.random.normal(k[5], (H, C), jnp.float32) * 0.1,
        "bias":    jax.random.normal(k[6], (1, H * C), jnp.float32) * 0.1,
        "gamma":   jnp.ones((1, H * C), jnp.float32),        # LayerNorm weight
        "beta":    jnp.zeros((1, H * C), jnp.float32),       # LayerNorm bias
        "prelu":   jnp.full((1, H * C), 0.25, jnp.float32),  # PReLU slope
    }

    x_after, (ei_out, alpha) = gat_module_forward(x, edge_index, params,
                                                  heads=H, out_ch=C)
    jax.block_until_ready((x_after, alpha))

    x_ref, alpha_ref = reference_forward(x, edge_index, params, heads=H, out_ch=C)
    # x_l / attention weights ride the MXU in bf16 (f32 accumulation), so the node
    # features are compared at bf16-appropriate tolerance; the per-edge alphas are
    # computed fully in f32 (exact divide over the kernel's f32 stats) -> 1e-3.
    assert jnp.allclose(x_after, x_ref, atol=2e-2, rtol=2e-2), \
        float(jnp.max(jnp.abs(x_after - x_ref)))
    assert jnp.allclose(alpha, alpha_ref, atol=1e-3, rtol=1e-3), \
        float(jnp.max(jnp.abs(alpha - alpha_ref)))
    assert bool(jnp.all(jnp.isfinite(x_after)))

    print("KERNEL_OK")
</pallas_src>

<mosaic_0001>
module attributes {stable_mosaic.version = 11 : i64} {
  func.func @proj_kernel(%arg0: i32, %arg1: memref<32x32xf32, #tpu.memory_space<vmem>>, %arg2: memref<32x40xf32, #tpu.memory_space<vmem>>, %arg3: memref<32x32xbf16, #tpu.memory_space<vmem>>, %arg4: memref<32x8xf32, #tpu.memory_space<vmem>>) attributes {dimension_semantics = [#tpu.dimension_semantics<parallel>], iteration_bounds = array<i64: 1>, scalar_prefetch = 0 : i64, scratch_operands = 0 : i64, tpu.core_type = #tpu.core_type<tc>, window_params = [{transform_indices = @transform_0, window_bounds = array<i64: 32, 32>}, {pipeline_mode = #tpu.pipeline_mode<synchronous>, transform_indices = @transform_1, window_bounds = array<i64: 32, 40>}, {transform_indices = @transform_2, window_bounds = array<i64: 32, 32>}, {transform_indices = @transform_3, window_bounds = array<i64: 32, 8>}]} {
    %c0 = arith.constant 0 : index
    %c0_0 = arith.constant 0 : index
    %0 = vector.load %arg1[%c0, %c0_0] : memref<32x32xf32, #tpu.memory_space<vmem>>, vector<32x32xf32>
    %c0_1 = arith.constant 0 : index
    %c0_2 = arith.constant 0 : index
    %1 = vector.load %arg2[%c0_1, %c0_2] : memref<32x40xf32, #tpu.memory_space<vmem>>, vector<32x40xf32>
    %cst = arith.constant dense<0.000000e+00> : vector<32x40xf32>
    %2 = tpu.matmul %0, %1, %cst {dimension_numbers = #tpu.dot_dimension_numbers<[1], [0], [0], [1], [0, 0, 1, 1], [], []>} : vector<32x32xf32>, vector<32x40xf32>, vector<32x40xf32> -> vector<32x40xf32>
    %3 = vector.extract_strided_slice %2 {offsets = [0, 0], sizes = [32, 32], strides = [1, 1]} : vector<32x40xf32> to vector<32x32xf32>
    %4 = arith.truncf %3 : vector<32x32xf32> to vector<32x32xbf16>
    %c0_3 = arith.constant 0 : index
    %c0_4 = arith.constant 0 : index
    %5 = vector.load %arg3[%c0_3, %c0_4] : memref<32x32xbf16, #tpu.memory_space<vmem>>, vector<32x32xbf16>
    tpu.vector_store %arg3[%c0_3, %c0_4], %4 {strides = array<i32>} : memref<32x32xbf16, #tpu.memory_space<vmem>>, vector<32x32xbf16>,
    %6 = vector.extract_strided_slice %2 {offsets = [0, 32], sizes = [32, 8], strides = [1, 1]} : vector<32x40xf32> to vector<32x8xf32>
    %c0_5 = arith.constant 0 : index
    %c0_6 = arith.constant 0 : index
    %7 = vector.load %arg4[%c0_5, %c0_6] : memref<32x8xf32, #tpu.memory_space<vmem>>, vector<32x8xf32>
    tpu.vector_store %arg4[%c0_5, %c0_6], %6 {strides = array<i32>} : memref<32x8xf32, #tpu.memory_space<vmem>>, vector<32x8xf32>,
    return
  }
  func.func @transform_0(%arg0: i32) -> (i32, i32) {
    %c0_i32 = arith.constant 0 : i32
    %c0_i32_0 = arith.constant 0 : i32
    return %arg0, %c0_i32 : i32, i32
  }
  func.func @transform_1(%arg0: i32) -> (i32, i32) {
    %c0_i32 = arith.constant 0 : i32
    %c0_i32_0 = arith.constant 0 : i32
    %c0_i32_1 = arith.constant 0 : i32
    return %c0_i32, %c0_i32_0 : i32, i32
  }
  func.func @transform_2(%arg0: i32) -> (i32, i32) {
    %c0_i32 = arith.constant 0 : i32
    %c0_i32_0 = arith.constant 0 : i32
    return %arg0, %c0_i32 : i32, i32
  }
  func.func @transform_3(%arg0: i32) -> (i32, i32) {
    %c0_i32 = arith.constant 0 : i32
    %c0_i32_0 = arith.constant 0 : i32
    return %arg0, %c0_i32 : i32, i32
  }
}

</mosaic_0001>

<llo_original>
// kernel: tpu_custom_call.1
$region0: #{tpu_custom_call.1}
  #allocation0 [shape = 'u32[]', space=smem, size = 0x4, offset = 0x4, fixed_abs, tag = 'smem constant byte address 0x4 - core index']
  #allocation1 [shape = 'u32[72,128]{1,0:T(1,128)}', space=vmem, size = 0x9000, scoped, tag = 'internal scratch']
  %s0 = inlined_call_operand.hbm [shape: f32[32,32], index: 0, kind: input, shape index: {}]
  %s1 = inlined_call_operand.hbm [shape: f32[32,40], index: 1, kind: input, shape index: {}]
  %s2 = inlined_call_operand.hbm [shape: bf16[32,32], index: 2, kind: output, shape index: {0}]
  %s3 = inlined_call_operand.vmem [shape: f32[32,8], index: 3, kind: output, shape index: {1}]
  %4 = xla_tuple %s2, %s3
  %s5 = sld [smem:[#allocation0]]
  $region34: #{tpu_custom_call.1} parent=0
    _
  %s7 = ssub.s32 1, %s5
  %s8 = scalar_select 0, %s7, %s5
  $region1: #{tpu_custom_call.1} parent=0
    #allocation2 [shape = 'u8[16384]{0}', space=vmem, size = 0x4000, scoped, tag = 'input window, operand 0, single buffered']
    #allocation3 [shape = 's32[1]{0}', space=sflag, size = 0x4, scoped, tag = 'scoped memory for tpu_custom_call.1']
    #allocation4 [shape = 's32[1]{0}', space=sflag, size = 0x4, scoped, tag = 'scoped memory for tpu_custom_call.1']
    #allocation5 [shape = 'u8[16384]{0}', space=vmem, size = 0x4000, scoped, tag = 'input window, operand 1, single buffered']
    #allocation6 [shape = 's32[1]{0}', space=sflag, size = 0x4, scoped, tag = 'scoped memory for tpu_custom_call.1']
    #allocation7 [shape = 'u8[8192]{0}', space=vmem, size = 0x2000, scoped, tag = 'output window, operand 0, single buffered']
    %9 = vsyncpa [#allocation3], 0
    %10 = vsyncpa [#allocation6], 0
    %11 = vsyncpa [#allocation4], 0
    // Predicated region
    $region2: #{tpu_custom_call.1} parent=1 // pred_check
      _
    $region3: #{tpu_custom_call.1} parent=1 // pred_check_branch
      %13 = sbr.rel (0) target = $region5
    $region4: #{tpu_custom_call.1} parent=1 // pred_region
      %15 = vsyncadd [#allocation3], 0
      %s16 = sshll.u32 %s0, 4
      %s17 = int_to_ptr.hbm [resolvable:$true] %s16
      %s18 = sshll.u32 [#allocation2], 4
      %s19 = int_to_ptr.vmem [resolvable:$true] %s18
      %24 = dma.hbm_to_vmem [thread:$0]  %s17, 512, %s19, [#allocation3], 128, 128, 8
    $region5: #{tpu_custom_call.1} parent=1 // pred_fallthru
      _
    // Predicated region
    $region6: #{tpu_custom_call.1} parent=1 // pred_check
      _
    $region7: #{tpu_custom_call.1} parent=1 // pred_check_branch
      %26 = sbr.rel (0) target = $region9
    $region8: #{tpu_custom_call.1} parent=1 // pred_region
      %28 = vsyncadd [#allocation6], 0
      %s29 = sshll.u32 %s1, 4
      %s30 = int_to_ptr.hbm [resolvable:$true] %s29
      %s31 = sshll.u32 [#allocation5], 4
      %s32 = int_to_ptr.vmem [resolvable:$true] %s31
      %37 = dma.hbm_to_vmem [thread:$0]  %s30, 512, %s32, [#allocation6], 128, 128, 8
    $region9: #{tpu_custom_call.1} parent=1 // pred_fallthru
      _
    // Predicated region
    $region10: #{tpu_custom_call.1} parent=1 // pred_check
      _
    $region11: #{tpu_custom_call.1} parent=1 // pred_check_branch
      %39 = sbr.rel (0) target = $region13
    $region12: #{tpu_custom_call.1} parent=1 // pred_region
      %41 = dma.done [#allocation3], 512
    $region13: #{tpu_custom_call.1} parent=1 // pred_fallthru
      _
    // Predicated region
    $region14: #{tpu_custom_call.1} parent=1 // pred_check
      _
    $region15: #{tpu_custom_call.1} parent=1 // pred_check_branch
      %43 = sbr.rel (0) target = $region17
    $region16: #{tpu_custom_call.1} parent=1 // pred_region
      %45 = dma.done [#allocation6], 512
    $region17: #{tpu_custom_call.1} parent=1 // pred_fallthru
      _
    %v46 = vld [vmem:[#allocation2] sm:$0xff]
    %v47 = vld [vmem:[#allocation2 + $0x8] sm:$0xff]
    %v48 = vld [vmem:[#allocation2 + $0x10] sm:$0xff]
    %v49 = vld [vmem:[#allocation2 + $0x18] sm:$0xff]
    %v50 = vld [vmem:[#allocation5] sm:$0xff]
    %v51 = vld [vmem:[#allocation5 + $0x8] sm:$0xff]
    %v52 = vld [vmem:[#allocation5 + $0x10] sm:$0xff]
    %v53 = vld [vmem:[#allocation5 + $0x18] sm:$0xff]
    %vm54 = vcmask 261120
    %v56 = vsel %vm54, %v46, 0
    %v59 = vsel %vm54, %v47, 0
    %v62 = vsel %vm54, %v48, 0
    %v65 = vsel %vm54, %v49, 0
    %67 = vmatpush.msra.mxu0 0.0
    %68 = vmatpush.msra.mxu0 0.0
    %69 = vmatpush.msra.mxu0 0.0
    %70 = vmatpush.msra.mxu0 0.0
    %71 = vmatpush.msra.mxu0 0.0
    %72 = vmatpush.msra.mxu0 0.0
    %73 = vmatpush.msra.mxu0 0.0
    %74 = vmatpush.msra.mxu0 0.0
    %75 = vmatpush.msra.mxu0 0.0
    %76 = vmatpush.msra.mxu0 0.0
    %77 = vmatpush.msra.mxu0 0.0
    %78 = vmatpush.msra.mxu0 0.0
    %79 = vmatpush.msra.mxu0 %v53
    %80 = vmatpush.msra.mxu0 %v52
    %81 = vmatpush.msra.mxu0 %v51
    %82 = vmatpush.msra.mxu0 %v50
    %83 = vmatmul.f32.gmra.mxu0 %v56
    %v84 = vpop.f32.mrf.mxu0
    %v85 = vadd.f32 0.0, %v84
    %86 = vmatmul.f32.gmra.mxu0 %v59
    %v87 = vpop.f32.mrf.mxu0
    %v88 = vadd.f32 0.0, %v87
    %89 = vmatmul.f32.gmra.mxu0 %v62
    %v90 = vpop.f32.mrf.mxu0
    %v91 = vadd.f32 0.0, %v90
    %92 = vmatmul.f32.gmra.mxu0 %v65
    %v93 = vpop.f32.mrf.mxu0
    %v94 = vadd.f32 0.0, %v93
    %95 = vdwg.mxu0
    %v96 = vpack.c.bf16 %v85, %v85
    %v97 = vpack.c.bf16 %v88, %v88
    %v98 = vpack.c.bf16 %v91, %v91
    %v99 = vpack.c.bf16 %v94, %v94
    %vm100 = vcmask 257024
    %101 = vst.msk [vmem:[#allocation7] sm:$0xf] %vm100, %v96
    %102 = vst.msk [vmem:[#allocation7 + $0x4] sm:$0xf] %vm100, %v97
    %103 = vst.msk [vmem:[#allocation7 + $0x8] sm:$0xf] %vm100, %v98
    %104 = vst.msk [vmem:[#allocation7 + $0xc] sm:$0xf] %vm100, %v99
    %109 = vrot.lane.b32.xlu0 %v85, 96
    %v110 = vpop.permute.xlu0 %109
    %111 = vrot.lane.b32.xlu0 %v88, 96
    %v112 = vpop.permute.xlu0 %111
    %113 = vrot.lane.b32.xlu0 %v91, 96
    %v114 = vpop.permute.xlu0 %113
    %115 = vrot.lane.b32.xlu0 %v94, 96
    %v116 = vpop.permute.xlu0 %115
    %vm121 = vcmask 64512
    %122 = vst.msk [vmem:[%s3] sm:$0xff] %vm121, %v110
    %123 = vst.msk [vmem:[%s3 + $0x8] sm:$0xff] %vm121, %v112
    %124 = vst.msk [vmem:[%s3 + $0x10] sm:$0xff] %vm121, %v114
    %125 = vst.msk [vmem:[%s3 + $0x18] sm:$0xff] %vm121, %v116
    // Predicated region
    $region18: #{tpu_custom_call.1} parent=1 // pred_check
      _
    $region19: #{tpu_custom_call.1} parent=1 // pred_check_branch
      %127 = sbr.rel (0) target = $region21
    $region20: #{tpu_custom_call.1} parent=1 // pred_region
      %129 = vsyncadd [#allocation4], 0
      %s130 = sshll.u32 [#allocation7], 4
      %s131 = int_to_ptr.vmem [resolvable:$true] %s130
      %s132 = sshll.u32 %s2, 4
      %s133 = int_to_ptr.hbm [resolvable:$true] %s132
      %138 = dma.vmem_to_hbm [thread:$0]  %s131, 256, %s133, [#allocation4], 64, 64, 4
    $region21: #{tpu_custom_call.1} parent=1 // pred_fallthru
      _
    // Predicated region
    $region22: #{tpu_custom_call.1} parent=1 // pred_check
      _
    $region23: #{tpu_custom_call.1} parent=1 // pred_check_branch
      %140 = sbr.rel (0) target = $region25
    $region24: #{tpu_custom_call.1} parent=1 // pred_region
      _
    $region25: #{tpu_custom_call.1} parent=1 // pred_fallthru
      _
    // Predicated region
    $region26: #{tpu_custom_call.1} parent=1 // pred_check
      _
    $region27: #{tpu_custom_call.1} parent=1 // pred_check_branch
      %142 = sbr.rel (0) target = $region29
    $region28: #{tpu_custom_call.1} parent=1 // pred_region
      %144 = dma.done [#allocation4], 256
    $region29: #{tpu_custom_call.1} parent=1 // pred_fallthru
      _
    // Predicated region
    $region30: #{tpu_custom_call.1} parent=1 // pred_check
      _
    $region31: #{tpu_custom_call.1} parent=1 // pred_check_branch
      %146 = sbr.rel (0) target = $region33
    $region32: #{tpu_custom_call.1} parent=1 // pred_region
      _
    $region33: #{tpu_custom_call.1} parent=1 // pred_fallthru
      _
    %147 = vsyncpa [#allocation3], 1
    %148 = vsyncpa [#allocation6], 1
    %149 = vsyncpa [#allocation4], 1

</llo_original>
